<compile_context>
chip_gen: v5e
topology: v5e:2x2
jax: 0.10.0
libtpu: 0.0.40
codegen_flags: <defaults>
</compile_context>

<pallas_src>
import functools

import jax
import jax.numpy as jnp
from jax.experimental import pallas as pl
from jax.experimental.pallas import tpu as pltpu

NUM_CONVS = 4
KSIZE = 4
# cat([y1, y2, y3]) with y1=[x1,x2], y2=[x1,x2,x3], y3=[x1,x2,x4]
# => block order along the batch axis (each block is N rows):
CAT_ORDER = (0, 1, 0, 1, 2, 0, 1, 3)

LANE = 128
SUBLANE = 8
MAX_TILE_N = 512
VMEM_BUDGET = 24 << 20          # double-buffered working-set target (fits v7x)
VMEM_LIMIT_BYTES = 48 << 20     # explicit scoped-VMEM limit (< v7x physical 64 MiB)


def _nasty_concat_kernel(x_ref, w_ref, b_ref, o_ref, *, lout):
    # x_ref: (TILE_N, Lpad) VMEM       -- squeezed NCL input tile (C == 1)
    # w_ref: (4, K) SMEM               -- one 1x1xK Conv1d kernel per row
    # b_ref: (4,)   SMEM               -- per-conv bias
    # o_ref: (8, TILE_N, Lout_pad) VMEM -- concatenated output blocks (lane-dense)
    x = x_ref[...].astype(jnp.float32)

    # Hoist the K shifted views once (4 slices instead of 4 convs x 4 taps = 16).
    xs = [x[:, k:k + lout] for k in range(KSIZE)]

    convs = []
    for c in range(NUM_CONVS):
        acc = w_ref[c, 0] * xs[0]
        for k in range(1, KSIZE):
            # valid 1-D convolution (cross-correlation, as torch.nn.Conv1d):
            # out[:, i] += w[c, k] * x[:, i + k]
            acc = acc + w_ref[c, k] * xs[k]
        # Cast each unique conv result exactly once.
        convs.append((acc + b_ref[c]).astype(o_ref.dtype))

    # torch.cat semantics: write each N-row block in CAT_ORDER. Each store is a
    # full (TILE_N, Lout_pad) lane-dense slab.
    for i, c in enumerate(CAT_ORDER):
        o_ref[i, :, :] = convs[c]


def nasty_concat(x, w, b):
    """x: (N, 1, L); w: (4, 1, 1, K); b: (4,). Returns (8*N, 1, L-K+1)."""
    n, c, l = x.shape
    assert c == 1
    ksize = w.shape[-1]
    assert ksize == KSIZE
    lout = l - ksize + 1
    assert lout >= 1

    # Pad the lane axis so Lout_pad is a multiple of 128 -> unmasked, dense stores.
    lout_pad = ((lout + LANE - 1) // LANE) * LANE
    l_pad = lout_pad + ksize - 1  # full extent on last dim (untiled) => legal block

    # Batch tile: multiple of 8, bounded by VMEM budget (output tile is 8x input
    # tile and dominates), by MAX_TILE_N, and by the (rounded-up) batch itself.
    bytes_per_row = 2 * (l_pad + len(CAT_ORDER) * lout_pad) * 4  # double-buffered
    budget_tile = max(SUBLANE, (VMEM_BUDGET // bytes_per_row) // SUBLANE * SUBLANE)
    n_rounded = ((n + SUBLANE - 1) // SUBLANE) * SUBLANE
    tile_n = min(MAX_TILE_N, budget_tile, n_rounded)
    n_pad = ((n + tile_n - 1) // tile_n) * tile_n

    x2d = (
        jnp.zeros((n_pad, l_pad), jnp.float32)
        .at[:n, :l]
        .set(x.reshape(n, l).astype(jnp.float32))
    )
    w2d = w.reshape(NUM_CONVS, ksize).astype(jnp.float32)
    b1d = b.astype(jnp.float32)

    grid = (n_pad // tile_n,)
    out = pl.pallas_call(
        functools.partial(_nasty_concat_kernel, lout=lout_pad),
        out_shape=jax.ShapeDtypeStruct((len(CAT_ORDER), n_pad, lout_pad), x.dtype),
        grid=grid,
        in_specs=[
            pl.BlockSpec((tile_n, l_pad), lambda i: (i, 0)),
            pl.BlockSpec(memory_space=pltpu.MemorySpace.SMEM),
            pl.BlockSpec(memory_space=pltpu.MemorySpace.SMEM),
        ],
        out_specs=pl.BlockSpec(
            (len(CAT_ORDER), tile_n, lout_pad), lambda i: (0, i, 0)
        ),
        compiler_params=pltpu.CompilerParams(
            dimension_semantics=("parallel",),
            vmem_limit_bytes=VMEM_LIMIT_BYTES,
        ),
    )(x2d, w2d, b1d)

    # Strip batch/lane padding, then (8, N, Lout) -> (8*N, 1, Lout): exact
    # torch.cat ordering along dim 0.
    out = out[:, :n, :lout]
    return out.reshape(len(CAT_ORDER) * n, 1, lout)


def _reference(x, w, b):
    """Pure-JAX reference of the torch forward (stack=False)."""
    n, _, l = x.shape
    ksize = w.shape[-1]
    lout = l - ksize + 1
    x2d = x.reshape(n, l)
    outs = []
    for c in range(NUM_CONVS):
        acc = jnp.zeros((n, lout), jnp.float32)
        for k in range(ksize):
            acc = acc + w[c, 0, 0, k] * x2d[:, k:k + lout]
        outs.append((acc + b[c]).reshape(n, 1, lout))
    x1, x2, x3, x4 = outs
    y1 = jnp.concatenate([x1, x2], axis=0)
    y2 = jnp.concatenate([y1, x3], axis=0)
    y3 = jnp.concatenate([y1, x4], axis=0)
    return jnp.concatenate([y1, y2, y3], axis=0)


if __name__ == "__main__":
    key = jax.random.PRNGKey(0)
    kx, kw, kb = jax.random.split(key, 3)

    N, C, L = 2, 1, 16
    x = jax.random.normal(kx, (N, C, L), dtype=jnp.float32)

    # Deterministic synthetic parameters: 4 Conv1d(1, 1, 4) layers.
    # (PyTorch Conv1d weight shape is (out_c, in_c, K) = (1, 1, 4); all four held
    #  as one (4, 1, 1, 4) array plus (4,) biases.)
    bound = 1.0 / (1 * KSIZE) ** 0.5  # PyTorch's default uniform bound
    w = jax.random.uniform(kw, (NUM_CONVS, 1, 1, KSIZE), jnp.float32, -bound, bound)
    b = jax.random.uniform(kb, (NUM_CONVS,), jnp.float32, -bound, bound)

    out = nasty_concat(x, w, b)
    out = jax.block_until_ready(out)

    ref = _reference(x, w, b)
    assert out.shape == (8 * N, 1, L - KSIZE + 1), out.shape
    assert jnp.allclose(out, ref, atol=1e-5, rtol=1e-5), "mismatch vs reference"

    print("KERNEL_OK")
</pallas_src>

<mosaic_0001>
module attributes {stable_mosaic.version = 11 : i64} {
  func.func @_nasty_concat_kernel(%arg0: i32, %arg1: memref<8x131xf32, #tpu.memory_space<vmem>>, %arg2: memref<4x4xf32, #tpu.memory_space<smem>>, %arg3: memref<4xf32, #tpu.memory_space<smem>>, %arg4: memref<8x8x128xf32, #tpu.memory_space<vmem>>) attributes {dimension_semantics = [#tpu.dimension_semantics<parallel>], iteration_bounds = array<i64: 1>, scalar_prefetch = 0 : i64, scratch_operands = 0 : i64, tpu.core_type = #tpu.core_type<tc>, window_params = [{transform_indices = @transform_0, window_bounds = array<i64: 8, 131>}, {transform_indices = @transform_1, window_bounds = array<i64: 4, 4>}, {transform_indices = @transform_2, window_bounds = array<i64: 4>}, {transform_indices = @transform_3, window_bounds = array<i64: 8, 8, 128>}]} {
    %c0 = arith.constant 0 : index
    %c0_0 = arith.constant 0 : index
    %0 = vector.load %arg1[%c0, %c0_0] : memref<8x131xf32, #tpu.memory_space<vmem>>, vector<8x131xf32>
    %1 = vector.extract_strided_slice %0 {offsets = [0, 0], sizes = [8, 128], strides = [1, 1]} : vector<8x131xf32> to vector<8x128xf32>
    %2 = vector.extract_strided_slice %0 {offsets = [0, 1], sizes = [8, 128], strides = [1, 1]} : vector<8x131xf32> to vector<8x128xf32>
    %3 = vector.extract_strided_slice %0 {offsets = [0, 2], sizes = [8, 128], strides = [1, 1]} : vector<8x131xf32> to vector<8x128xf32>
    %4 = vector.extract_strided_slice %0 {offsets = [0, 3], sizes = [8, 128], strides = [1, 1]} : vector<8x131xf32> to vector<8x128xf32>
    %c0_1 = arith.constant 0 : index
    %c0_2 = arith.constant 0 : index
    %5 = memref.load %arg2[%c0_1, %c0_2] : memref<4x4xf32, #tpu.memory_space<smem>>
    %6 = vector.broadcast %5 : f32 to vector<8x128xf32>
    %7 = arith.mulf %6, %1 : vector<8x128xf32>
    %c0_3 = arith.constant 0 : index
    %c1 = arith.constant 1 : index
    %8 = memref.load %arg2[%c0_3, %c1] : memref<4x4xf32, #tpu.memory_space<smem>>
    %9 = vector.broadcast %8 : f32 to vector<8x128xf32>
    %10 = arith.mulf %9, %2 : vector<8x128xf32>
    %11 = arith.addf %7, %10 : vector<8x128xf32>
    %c0_4 = arith.constant 0 : index
    %c2 = arith.constant 2 : index
    %12 = memref.load %arg2[%c0_4, %c2] : memref<4x4xf32, #tpu.memory_space<smem>>
    %13 = vector.broadcast %12 : f32 to vector<8x128xf32>
    %14 = arith.mulf %13, %3 : vector<8x128xf32>
    %15 = arith.addf %11, %14 : vector<8x128xf32>
    %c0_5 = arith.constant 0 : index
    %c3 = arith.constant 3 : index
    %16 = memref.load %arg2[%c0_5, %c3] : memref<4x4xf32, #tpu.memory_space<smem>>
    %17 = vector.broadcast %16 : f32 to vector<8x128xf32>
    %18 = arith.mulf %17, %4 : vector<8x128xf32>
    %19 = arith.addf %15, %18 : vector<8x128xf32>
    %c0_6 = arith.constant 0 : index
    %20 = memref.load %arg3[%c0_6] : memref<4xf32, #tpu.memory_space<smem>>
    %21 = vector.broadcast %20 : f32 to vector<8x128xf32>
    %22 = arith.addf %19, %21 : vector<8x128xf32>
    %c1_7 = arith.constant 1 : index
    %c0_8 = arith.constant 0 : index
    %23 = memref.load %arg2[%c1_7, %c0_8] : memref<4x4xf32, #tpu.memory_space<smem>>
    %24 = vector.broadcast %23 : f32 to vector<8x128xf32>
    %25 = arith.mulf %24, %1 : vector<8x128xf32>
    %c1_9 = arith.constant 1 : index
    %c1_10 = arith.constant 1 : index
    %26 = memref.load %arg2[%c1_9, %c1_10] : memref<4x4xf32, #tpu.memory_space<smem>>
    %27 = vector.broadcast %26 : f32 to vector<8x128xf32>
    %28 = arith.mulf %27, %2 : vector<8x128xf32>
    %29 = arith.addf %25, %28 : vector<8x128xf32>
    %c1_11 = arith.constant 1 : index
    %c2_12 = arith.constant 2 : index
    %30 = memref.load %arg2[%c1_11, %c2_12] : memref<4x4xf32, #tpu.memory_space<smem>>
    %31 = vector.broadcast %30 : f32 to vector<8x128xf32>
    %32 = arith.mulf %31, %3 : vector<8x128xf32>
    %33 = arith.addf %29, %32 : vector<8x128xf32>
    %c1_13 = arith.constant 1 : index
    %c3_14 = arith.constant 3 : index
    %34 = memref.load %arg2[%c1_13, %c3_14] : memref<4x4xf32, #tpu.memory_space<smem>>
    %35 = vector.broadcast %34 : f32 to vector<8x128xf32>
    %36 = arith.mulf %35, %4 : vector<8x128xf32>
    %37 = arith.addf %33, %36 : vector<8x128xf32>
    %c1_15 = arith.constant 1 : index
    %38 = memref.load %arg3[%c1_15] : memref<4xf32, #tpu.memory_space<smem>>
    %39 = vector.broadcast %38 : f32 to vector<8x128xf32>
    %40 = arith.addf %37, %39 : vector<8x128xf32>
    %c2_16 = arith.constant 2 : index
    %c0_17 = arith.constant 0 : index
    %41 = memref.load %arg2[%c2_16, %c0_17] : memref<4x4xf32, #tpu.memory_space<smem>>
    %42 = vector.broadcast %41 : f32 to vector<8x128xf32>
    %43 = arith.mulf %42, %1 : vector<8x128xf32>
    %c2_18 = arith.constant 2 : index
    %c1_19 = arith.constant 1 : index
    %44 = memref.load %arg2[%c2_18, %c1_19] : memref<4x4xf32, #tpu.memory_space<smem>>
    %45 = vector.broadcast %44 : f32 to vector<8x128xf32>
    %46 = arith.mulf %45, %2 : vector<8x128xf32>
    %47 = arith.addf %43, %46 : vector<8x128xf32>
    %c2_20 = arith.constant 2 : index
    %c2_21 = arith.constant 2 : index
    %48 = memref.load %arg2[%c2_20, %c2_21] : memref<4x4xf32, #tpu.memory_space<smem>>
    %49 = vector.broadcast %48 : f32 to vector<8x128xf32>
    %50 = arith.mulf %49, %3 : vector<8x128xf32>
    %51 = arith.addf %47, %50 : vector<8x128xf32>
    %c2_22 = arith.constant 2 : index
    %c3_23 = arith.constant 3 : index
    %52 = memref.load %arg2[%c2_22, %c3_23] : memref<4x4xf32, #tpu.memory_space<smem>>
    %53 = vector.broadcast %52 : f32 to vector<8x128xf32>
    %54 = arith.mulf %53, %4 : vector<8x128xf32>
    %55 = arith.addf %51, %54 : vector<8x128xf32>
    %c2_24 = arith.constant 2 : index
    %56 = memref.load %arg3[%c2_24] : memref<4xf32, #tpu.memory_space<smem>>
    %57 = vector.broadcast %56 : f32 to vector<8x128xf32>
    %58 = arith.addf %55, %57 : vector<8x128xf32>
    %c3_25 = arith.constant 3 : index
    %c0_26 = arith.constant 0 : index
    %59 = memref.load %arg2[%c3_25, %c0_26] : memref<4x4xf32, #tpu.memory_space<smem>>
    %60 = vector.broadcast %59 : f32 to vector<8x128xf32>
    %61 = arith.mulf %60, %1 : vector<8x128xf32>
    %c3_27 = arith.constant 3 : index
    %c1_28 = arith.constant 1 : index
    %62 = memref.load %arg2[%c3_27, %c1_28] : memref<4x4xf32, #tpu.memory_space<smem>>
    %63 = vector.broadcast %62 : f32 to vector<8x128xf32>
    %64 = arith.mulf %63, %2 : vector<8x128xf32>
    %65 = arith.addf %61, %64 : vector<8x128xf32>
    %c3_29 = arith.constant 3 : index
    %c2_30 = arith.constant 2 : index
    %66 = memref.load %arg2[%c3_29, %c2_30] : memref<4x4xf32, #tpu.memory_space<smem>>
    %67 = vector.broadcast %66 : f32 to vector<8x128xf32>
    %68 = arith.mulf %67, %3 : vector<8x128xf32>
    %69 = arith.addf %65, %68 : vector<8x128xf32>
    %c3_31 = arith.constant 3 : index
    %c3_32 = arith.constant 3 : index
    %70 = memref.load %arg2[%c3_31, %c3_32] : memref<4x4xf32, #tpu.memory_space<smem>>
    %71 = vector.broadcast %70 : f32 to vector<8x128xf32>
    %72 = arith.mulf %71, %4 : vector<8x128xf32>
    %73 = arith.addf %69, %72 : vector<8x128xf32>
    %c3_33 = arith.constant 3 : index
    %74 = memref.load %arg3[%c3_33] : memref<4xf32, #tpu.memory_space<smem>>
    %75 = vector.broadcast %74 : f32 to vector<8x128xf32>
    %76 = arith.addf %73, %75 : vector<8x128xf32>
    %c0_34 = arith.constant 0 : index
    %c0_35 = arith.constant 0 : index
    %c0_36 = arith.constant 0 : index
    %77 = vector.load %arg4[%c0_34, %c0_35, %c0_36] : memref<8x8x128xf32, #tpu.memory_space<vmem>>, vector<1x8x128xf32>
    %78 = vector.shape_cast %77 : vector<1x8x128xf32> to vector<8x128xf32>
    %79 = vector.shape_cast %22 : vector<8x128xf32> to vector<1x8x128xf32>
    tpu.vector_store %arg4[%c0_34, %c0_35, %c0_36], %79 {strides = array<i32>} : memref<8x8x128xf32, #tpu.memory_space<vmem>>, vector<1x8x128xf32>,
    %c1_37 = arith.constant 1 : index
    %c0_38 = arith.constant 0 : index
    %c0_39 = arith.constant 0 : index
    %80 = vector.load %arg4[%c1_37, %c0_38, %c0_39] : memref<8x8x128xf32, #tpu.memory_space<vmem>>, vector<1x8x128xf32>
    %81 = vector.shape_cast %80 : vector<1x8x128xf32> to vector<8x128xf32>
    %82 = vector.shape_cast %40 : vector<8x128xf32> to vector<1x8x128xf32>
    tpu.vector_store %arg4[%c1_37, %c0_38, %c0_39], %82 {strides = array<i32>} : memref<8x8x128xf32, #tpu.memory_space<vmem>>, vector<1x8x128xf32>,
    %c2_40 = arith.constant 2 : index
    %c0_41 = arith.constant 0 : index
    %c0_42 = arith.constant 0 : index
    %83 = vector.load %arg4[%c2_40, %c0_41, %c0_42] : memref<8x8x128xf32, #tpu.memory_space<vmem>>, vector<1x8x128xf32>
    %84 = vector.shape_cast %83 : vector<1x8x128xf32> to vector<8x128xf32>
    %85 = vector.shape_cast %22 : vector<8x128xf32> to vector<1x8x128xf32>
    tpu.vector_store %arg4[%c2_40, %c0_41, %c0_42], %85 {strides = array<i32>} : memref<8x8x128xf32, #tpu.memory_space<vmem>>, vector<1x8x128xf32>,
    %c3_43 = arith.constant 3 : index
    %c0_44 = arith.constant 0 : index
    %c0_45 = arith.constant 0 : index
    %86 = vector.load %arg4[%c3_43, %c0_44, %c0_45] : memref<8x8x128xf32, #tpu.memory_space<vmem>>, vector<1x8x128xf32>
    %87 = vector.shape_cast %86 : vector<1x8x128xf32> to vector<8x128xf32>
    %88 = vector.shape_cast %40 : vector<8x128xf32> to vector<1x8x128xf32>
    tpu.vector_store %arg4[%c3_43, %c0_44, %c0_45], %88 {strides = array<i32>} : memref<8x8x128xf32, #tpu.memory_space<vmem>>, vector<1x8x128xf32>,
    %c4 = arith.constant 4 : index
    %c0_46 = arith.constant 0 : index
    %c0_47 = arith.constant 0 : index
    %89 = vector.load %arg4[%c4, %c0_46, %c0_47] : memref<8x8x128xf32, #tpu.memory_space<vmem>>, vector<1x8x128xf32>
    %90 = vector.shape_cast %89 : vector<1x8x128xf32> to vector<8x128xf32>
    %91 = vector.shape_cast %58 : vector<8x128xf32> to vector<1x8x128xf32>
    tpu.vector_store %arg4[%c4, %c0_46, %c0_47], %91 {strides = array<i32>} : memref<8x8x128xf32, #tpu.memory_space<vmem>>, vector<1x8x128xf32>,
    %c5 = arith.constant 5 : index
    %c0_48 = arith.constant 0 : index
    %c0_49 = arith.constant 0 : index
    %92 = vector.load %arg4[%c5, %c0_48, %c0_49] : memref<8x8x128xf32, #tpu.memory_space<vmem>>, vector<1x8x128xf32>
    %93 = vector.shape_cast %92 : vector<1x8x128xf32> to vector<8x128xf32>
    %94 = vector.shape_cast %22 : vector<8x128xf32> to vector<1x8x128xf32>
    tpu.vector_store %arg4[%c5, %c0_48, %c0_49], %94 {strides = array<i32>} : memref<8x8x128xf32, #tpu.memory_space<vmem>>, vector<1x8x128xf32>,
    %c6 = arith.constant 6 : index
    %c0_50 = arith.constant 0 : index
    %c0_51 = arith.constant 0 : index
    %95 = vector.load %arg4[%c6, %c0_50, %c0_51] : memref<8x8x128xf32, #tpu.memory_space<vmem>>, vector<1x8x128xf32>
    %96 = vector.shape_cast %95 : vector<1x8x128xf32> to vector<8x128xf32>
    %97 = vector.shape_cast %40 : vector<8x128xf32> to vector<1x8x128xf32>
    tpu.vector_store %arg4[%c6, %c0_50, %c0_51], %97 {strides = array<i32>} : memref<8x8x128xf32, #tpu.memory_space<vmem>>, vector<1x8x128xf32>,
    %c7 = arith.constant 7 : index
    %c0_52 = arith.constant 0 : index
    %c0_53 = arith.constant 0 : index
    %98 = vector.load %arg4[%c7, %c0_52, %c0_53] : memref<8x8x128xf32, #tpu.memory_space<vmem>>, vector<1x8x128xf32>
    %99 = vector.shape_cast %98 : vector<1x8x128xf32> to vector<8x128xf32>
    %100 = vector.shape_cast %76 : vector<8x128xf32> to vector<1x8x128xf32>
    tpu.vector_store %arg4[%c7, %c0_52, %c0_53], %100 {strides = array<i32>} : memref<8x8x128xf32, #tpu.memory_space<vmem>>, vector<1x8x128xf32>,
    return
  }
  func.func @transform_0(%arg0: i32) -> (i32, i32) {
    %c0_i32 = arith.constant 0 : i32
    %c0_i32_0 = arith.constant 0 : i32
    return %arg0, %c0_i32 : i32, i32
  }
  func.func @transform_1(%arg0: i32) -> (i32, i32) {
    %c0_i32 = arith.constant 0 : i32
    %c0_i32_0 = arith.constant 0 : i32
    %c0_i32_1 = arith.constant 0 : i32
    return %c0_i32, %c0_i32_0 : i32, i32
  }
  func.func @transform_2(%arg0: i32) -> i32 {
    %c0_i32 = arith.constant 0 : i32
    %c0_i32_0 = arith.constant 0 : i32
    return %c0_i32 : i32
  }
  func.func @transform_3(%arg0: i32) -> (i32, i32, i32) {
    %c0_i32 = arith.constant 0 : i32
    %c0_i32_0 = arith.constant 0 : i32
    %c0_i32_1 = arith.constant 0 : i32
    return %c0_i32, %arg0, %c0_i32_0 : i32, i32, i32
  }
}

</mosaic_0001>

<llo_original>
// kernel: tpu_custom_call.1
$region0: #{tpu_custom_call.1}
  #allocation0 [shape = 'u32[]', space=smem, size = 0x4, offset = 0x4, fixed_abs, tag = 'smem constant byte address 0x4 - core index']
  #allocation1 [shape = 'u32[72,128]{1,0:T(1,128)}', space=vmem, size = 0x9000, scoped, tag = 'internal scratch']
  %s0 = inlined_call_operand.hbm [shape: f32[8,131], index: 0, kind: input, shape index: {}]
  %s1 = inlined_call_operand.hbm [shape: f32[4,4], index: 1, kind: input, shape index: {}]
  %s2 = inlined_call_operand.vmem [shape: f32[4], index: 2, kind: input, shape index: {}]
  %s3 = inlined_call_operand.hbm [shape: f32[8,8,128], index: 3, kind: output, shape index: {}]
  %s4 = sld [smem:[#allocation0]]
  $region34: #{tpu_custom_call.1} parent=0
    _
  %s6 = ssub.s32 1, %s4
  %s7 = scalar_select 0, %s6, %s4
  $region1: #{tpu_custom_call.1} parent=0
    #allocation2 [shape = 'u8[8192]{0}', space=vmem, size = 0x2000, scoped, tag = 'input window, operand 0, single buffered']
    #allocation3 [shape = 's32[1]{0}', space=sflag, size = 0x4, scoped, tag = 'scoped memory for tpu_custom_call.1']
    #allocation4 [shape = 's32[1]{0}', space=sflag, size = 0x4, scoped, tag = 'scoped memory for tpu_custom_call.1']
    #allocation5 [shape = 's32[1]{0}', space=sflag, size = 0x4, scoped, tag = 'scoped memory for tpu_custom_call.1']
    #allocation6 [shape = 's32[1]{0}', space=sflag, size = 0x4, scoped, tag = 'scoped memory for tpu_custom_call.1']
    #allocation7 [shape = 'u8[2048]{0}', space=smem, size = 0x800, scoped, tag = 'input window, operand 1, single buffered']
    #allocation8 [shape = 'u8[512]{0}', space=smem, size = 0x200, scoped, tag = 'input window, operand 2, single buffered']
    #allocation9 [shape = 'u8[32768]{0}', space=vmem, size = 0x8000, scoped, tag = 'output window, operand 0, single buffered']
    %8 = vsyncpa [#allocation3], 0
    %9 = vsyncpa [#allocation5], 0
    %10 = vsyncpa [#allocation6], 0
    %11 = vsyncpa [#allocation4], 0
    // Predicated region
    $region2: #{tpu_custom_call.1} parent=1 // pred_check
      _
    $region3: #{tpu_custom_call.1} parent=1 // pred_check_branch
      %13 = sbr.rel (0) target = $region5
    $region4: #{tpu_custom_call.1} parent=1 // pred_region
      %15 = vsyncadd [#allocation3], 0
      %s17 = sshll.u32 %s0, 4
      %s18 = int_to_ptr.hbm [resolvable:$true] %s17
      %s19 = sshll.u32 [#allocation2], 4
      %s20 = int_to_ptr.vmem [resolvable:$true] %s19
      %22 = dma.hbm_to_vmem [thread:$0]  %s18, 256, %s20, [#allocation3]
    $region5: #{tpu_custom_call.1} parent=1 // pred_fallthru
      _
    // Predicated region
    $region6: #{tpu_custom_call.1} parent=1 // pred_check
      _
    $region7: #{tpu_custom_call.1} parent=1 // pred_check_branch
      %24 = sbr.rel (0) target = $region9
    $region8: #{tpu_custom_call.1} parent=1 // pred_region
      %26 = vsyncadd [#allocation5], 0
      %s28 = sshll.u32 %s1, 4
      %s29 = int_to_ptr.hbm [resolvable:$true] %s28
      %31 = dma.hbm_to_smem %s29, 64, [#allocation7], [#allocation5]
    $region9: #{tpu_custom_call.1} parent=1 // pred_fallthru
      _
    // Predicated region
    $region10: #{tpu_custom_call.1} parent=1 // pred_check
      _
    $region11: #{tpu_custom_call.1} parent=1 // pred_check_branch
      %33 = sbr.rel (0) target = $region13
    $region12: #{tpu_custom_call.1} parent=1 // pred_region
      %35 = vsyncadd [#allocation6], 0
      %s37 = sshll.u32 %s2, 4
      %s38 = int_to_ptr.vmem [resolvable:$true] %s37
      %40 = dma.vmem_to_smem %s38, 16, [#allocation8], [#allocation6]
    $region13: #{tpu_custom_call.1} parent=1 // pred_fallthru
      _
    // Predicated region
    $region14: #{tpu_custom_call.1} parent=1 // pred_check
      _
    $region15: #{tpu_custom_call.1} parent=1 // pred_check_branch
      %42 = sbr.rel (0) target = $region17
    $region16: #{tpu_custom_call.1} parent=1 // pred_region
      %44 = dma.done [#allocation3], 256
    $region17: #{tpu_custom_call.1} parent=1 // pred_fallthru
      _
    // Predicated region
    $region18: #{tpu_custom_call.1} parent=1 // pred_check
      _
    $region19: #{tpu_custom_call.1} parent=1 // pred_check_branch
      %46 = sbr.rel (0) target = $region21
    $region20: #{tpu_custom_call.1} parent=1 // pred_region
      %48 = dma.done [#allocation5], 64
    $region21: #{tpu_custom_call.1} parent=1 // pred_fallthru
      _
    // Predicated region
    $region22: #{tpu_custom_call.1} parent=1 // pred_check
      _
    $region23: #{tpu_custom_call.1} parent=1 // pred_check_branch
      %50 = sbr.rel (0) target = $region25
    $region24: #{tpu_custom_call.1} parent=1 // pred_region
      %52 = dma.done [#allocation6], 16
    $region25: #{tpu_custom_call.1} parent=1 // pred_fallthru
      _
    %53 = sfence
    %v54 = vld [vmem:[#allocation2] sm:$0xff]
    %v55 = vld [vmem:[#allocation2 + $0x8] sm:$0xff]
    %s56 = sld [smem:[#allocation7]]
    %v57 = vstv %s56
    %v58 = vmul.f32 %v57, %v54
    %s59 = sld [smem:[#allocation7 + $0x1]]
    %v60 = vstv %s59
    %v61 = vmul.f32 %v60, %v54
    %v62 = vmul.f32 %v60, %v55
    %65 = vrot.lane.b32.xlu0 %v61, 127
    %v66 = vpop.permute.xlu0 %65
    %67 = vrot.lane.b32.xlu0 %v62, 127
    %v68 = vpop.permute.xlu0 %67
    %vm69 = vcmask 1039360
    %v70 = vsel %vm69, %v66, %v68
    %v72 = vadd.f32 %v58, %v70
    %s73 = sld [smem:[#allocation7 + $0x2]]
    %v74 = vstv %s73
    %v75 = vmul.f32 %v74, %v54
    %v76 = vmul.f32 %v74, %v55
    %79 = vrot.lane.b32.xlu0 %v75, 126
    %v80 = vpop.permute.xlu0 %79
    %81 = vrot.lane.b32.xlu0 %v76, 126
    %v82 = vpop.permute.xlu0 %81
    %vm83 = vcmask 1031168
    %v84 = vsel %vm83, %v80, %v82
    %v86 = vadd.f32 %v72, %v84
    %s87 = sld [smem:[#allocation7 + $0x3]]
    %v88 = vstv %s87
    %v89 = vmul.f32 %v88, %v54
    %v90 = vmul.f32 %v88, %v55
    %93 = vrot.lane.b32.xlu0 %v89, 125
    %v94 = vpop.permute.xlu0 %93
    %95 = vrot.lane.b32.xlu0 %v90, 125
    %v96 = vpop.permute.xlu0 %95
    %vm97 = vcmask 1022976
    %v98 = vsel %vm97, %v94, %v96
    %v100 = vadd.f32 %v86, %v98
    %s101 = sld [smem:[#allocation8]]
    %v102 = vstv %s101
    %v103 = vadd.f32 %v100, %v102
    %s104 = sld [smem:[#allocation7 + $0x80]]
    %v105 = vstv %s104
    %v106 = vmul.f32 %v105, %v54
    %s107 = sld [smem:[#allocation7 + $0x81]]
    %v108 = vstv %s107
    %v109 = vmul.f32 %v108, %v54
    %v110 = vmul.f32 %v108, %v55
    %113 = vrot.lane.b32.xlu0 %v109, 127
    %v114 = vpop.permute.xlu0 %113
    %115 = vrot.lane.b32.xlu0 %v110, 127
    %v116 = vpop.permute.xlu0 %115
    %v117 = vsel %vm69, %v114, %v116
    %v119 = vadd.f32 %v106, %v117
    %s120 = sld [smem:[#allocation7 + $0x82]]
    %v121 = vstv %s120
    %v122 = vmul.f32 %v121, %v54
    %v123 = vmul.f32 %v121, %v55
    %126 = vrot.lane.b32.xlu0 %v122, 126
    %v127 = vpop.permute.xlu0 %126
    %128 = vrot.lane.b32.xlu0 %v123, 126
    %v129 = vpop.permute.xlu0 %128
    %v130 = vsel %vm83, %v127, %v129
    %v132 = vadd.f32 %v119, %v130
    %s133 = sld [smem:[#allocation7 + $0x83]]
    %v134 = vstv %s133
    %v135 = vmul.f32 %v134, %v54
    %v136 = vmul.f32 %v134, %v55
    %139 = vrot.lane.b32.xlu0 %v135, 125
    %v140 = vpop.permute.xlu0 %139
    %141 = vrot.lane.b32.xlu0 %v136, 125
    %v142 = vpop.permute.xlu0 %141
    %v143 = vsel %vm97, %v140, %v142
    %v145 = vadd.f32 %v132, %v143
    %s146 = sld [smem:[#allocation8 + $0x1]]
    %v147 = vstv %s146
    %v148 = vadd.f32 %v145, %v147
    %s149 = sld [smem:[#allocation7 + $0x100]]
    %v150 = vstv %s149
    %v151 = vmul.f32 %v150, %v54
    %s152 = sld [smem:[#allocation7 + $0x101]]
    %v153 = vstv %s152
    %v154 = vmul.f32 %v153, %v54
    %v155 = vmul.f32 %v153, %v55
    %158 = vrot.lane.b32.xlu0 %v154, 127
    %v159 = vpop.permute.xlu0 %158
    %160 = vrot.lane.b32.xlu0 %v155, 127
    %v161 = vpop.permute.xlu0 %160
    %v162 = vsel %vm69, %v159, %v161
    %v164 = vadd.f32 %v151, %v162
    %s165 = sld [smem:[#allocation7 + $0x102]]
    %v166 = vstv %s165
    %v167 = vmul.f32 %v166, %v54
    %v168 = vmul.f32 %v166, %v55
    %171 = vrot.lane.b32.xlu0 %v167, 126
    %v172 = vpop.permute.xlu0 %171
    %173 = vrot.lane.b32.xlu0 %v168, 126
    %v174 = vpop.permute.xlu0 %173
    %v175 = vsel %vm83, %v172, %v174
    %v177 = vadd.f32 %v164, %v175
    %s178 = sld [smem:[#allocation7 + $0x103]]
    %v179 = vstv %s178
    %v180 = vmul.f32 %v179, %v54
    %v181 = vmul.f32 %v179, %v55
    %184 = vrot.lane.b32.xlu0 %v180, 125
    %v185 = vpop.permute.xlu0 %184
    %186 = vrot.lane.b32.xlu0 %v181, 125
    %v187 = vpop.permute.xlu0 %186
    %v188 = vsel %vm97, %v185, %v187
    %v190 = vadd.f32 %v177, %v188
    %s191 = sld [smem:[#allocation8 + $0x2]]
    %v192 = vstv %s191
    %v193 = vadd.f32 %v190, %v192
    %s194 = sld [smem:[#allocation7 + $0x180]]
    %v195 = vstv %s194
    %v196 = vmul.f32 %v195, %v54
    %s197 = sld [smem:[#allocation7 + $0x181]]
    %v198 = vstv %s197
    %v199 = vmul.f32 %v198, %v54
    %v200 = vmul.f32 %v198, %v55
    %203 = vrot.lane.b32.xlu0 %v199, 127
    %v204 = vpop.permute.xlu0 %203
    %205 = vrot.lane.b32.xlu0 %v200, 127
    %v206 = vpop.permute.xlu0 %205
    %v207 = vsel %vm69, %v204, %v206
    %v209 = vadd.f32 %v196, %v207
    %s210 = sld [smem:[#allocation7 + $0x182]]
    %v211 = vstv %s210
    %v212 = vmul.f32 %v211, %v54
    %v213 = vmul.f32 %v211, %v55
    %216 = vrot.lane.b32.xlu0 %v212, 126
    %v217 = vpop.permute.xlu0 %216
    %218 = vrot.lane.b32.xlu0 %v213, 126
    %v219 = vpop.permute.xlu0 %218
    %v220 = vsel %vm83, %v217, %v219
    %v222 = vadd.f32 %v209, %v220
    %s223 = sld [smem:[#allocation7 + $0x183]]
    %v224 = vstv %s223
    %v225 = vmul.f32 %v224, %v54
    %v226 = vmul.f32 %v224, %v55
    %229 = vrot.lane.b32.xlu0 %v225, 125
    %v230 = vpop.permute.xlu0 %229
    %231 = vrot.lane.b32.xlu0 %v226, 125
    %v232 = vpop.permute.xlu0 %231
    %v233 = vsel %vm97, %v230, %v232
    %v235 = vadd.f32 %v222, %v233
    %s236 = sld [smem:[#allocation8 + $0x3]]
    %v237 = vstv %s236
    %v238 = vadd.f32 %v235, %v237
    %239 = vst [vmem:[#allocation9] sm:$0xff] %v103
    %s240 = scalar_lea.vmem [#allocation9], 8
    %241 = vst [vmem:[%s240] sm:$0xff] %v148
    %s242 = scalar_lea.vmem [#allocation9], 16
    %243 = vst [vmem:[%s242] sm:$0xff] %v103
    %s244 = scalar_lea.vmem [#allocation9], 24
    %245 = vst [vmem:[%s244] sm:$0xff] %v148
    %s246 = scalar_lea.vmem [#allocation9], 32
    %247 = vst [vmem:[%s246] sm:$0xff] %v193
    %s248 = scalar_lea.vmem [#allocation9], 40
    %249 = vst [vmem:[%s248] sm:$0xff] %v103
    %s250 = scalar_lea.vmem [#allocation9], 48
    %251 = vst [vmem:[%s250] sm:$0xff] %v148
    %s252 = scalar_lea.vmem [#allocation9], 56
    %253 = vst [vmem:[%s252] sm:$0xff] %v238
    // Predicated region
    $region26: #{tpu_custom_call.1} parent=1 // pred_check
      _
    $region27: #{tpu_custom_call.1} parent=1 // pred_check_branch
      %255 = sbr.rel (0) target = $region29
    $region28: #{tpu_custom_call.1} parent=1 // pred_region
      %257 = vsyncadd [#allocation4], 0
      %s258 = sshll.u32 [#allocation9], 4
      %s259 = int_to_ptr.vmem [resolvable:$true] %s258
      %s260 = sshll.u32 %s3, 4
      %s261 = int_to_ptr.hbm [resolvable:$true] %s260
      %266 = dma.vmem_to_hbm [thread:$0]  %s259, 1024, %s261, [#allocation4], 128, 128, 8
    $region29: #{tpu_custom_call.1} parent=1 // pred_fallthru
      _
    // Predicated region
    $region30: #{tpu_custom_call.1} parent=1 // pred_check
      _
    $region31: #{tpu_custom_call.1} parent=1 // pred_check_branch
      %268 = sbr.rel (0) target = $region33
    $region32: #{tpu_custom_call.1} parent=1 // pred_region
      %270 = dma.done [#allocation4], 1024
    $region33: #{tpu_custom_call.1} parent=1 // pred_fallthru
      _
    %271 = vsyncpa [#allocation3], 1
    %272 = vsyncpa [#allocation4], 1
    %273 = vsyncpa [#allocation5], 1
    %274 = vsyncpa [#allocation6], 1

</llo_original>
